<compile_context>
chip_gen: v6e
topology: v6e:2x2x1
jax: 0.10.0
libtpu: 0.0.40
codegen_flags: <defaults>
</compile_context>

<pallas_src>
import math
import functools

import jax
import jax.numpy as jnp
from jax import lax
from jax.experimental import pallas as pl
from jax.experimental.pallas import tpu as pltpu


_LANES = 128


def _pick_tile(dim, pref, *aligns):
    """Largest divisor of `dim` that is <= pref and a multiple of one of
    `aligns` (tried in order); falls back to the full dimension."""
    if dim <= pref:
        return dim
    for align in aligns:
        t = (pref // align) * align
        while t >= align:
            if dim % t == 0:
                return t
            t -= align
    return dim


def _vmem_limit():
    """Generation-aware VMEM budget: half of physical, capped at 64 MiB
    (v5e/v6e: 128 MiB phys -> 64 MiB; v7x: 64 MiB phys -> 32 MiB)."""
    try:
        cap = pltpu.get_tpu_info().vmem_capacity_bytes
    except Exception:
        cap = 64 * 1024 * 1024  # conservative fallback
    return int(min(max(cap // 2, 32 * 1024 * 1024), 64 * 1024 * 1024))


def _assert_fits(nbytes, limit, name):
    assert nbytes <= limit, (
        f"{name}: tiling needs ~{nbytes / 2**20:.1f} MiB VMEM > "
        f"limit {limit / 2**20:.1f} MiB; reduce tile prefs")


# --------------------------------------------------------------------------
# Kernel 1: stacked tiled linear   y[s] = x @ W[s] + b[s]
#   grid = (S, M/tm, N/tn, K/tk), k innermost, f32 VMEM accumulator,
#   bias folded into the accumulator init.
# --------------------------------------------------------------------------
def _linear_kernel(x_ref, w_ref, b_ref, o_ref, acc_ref):
    k = pl.program_id(3)

    @pl.when(k == 0)
    def _():
        # Fold bias into the accumulator init (no add in the epilogue).
        acc_ref[...] = jnp.broadcast_to(b_ref[0], acc_ref.shape).astype(jnp.float32)

    acc_ref[...] += jnp.dot(x_ref[...], w_ref[0],
                            preferred_element_type=jnp.float32)

    @pl.when(k == pl.num_programs(3) - 1)
    def _():
        o_ref[0] = acc_ref[...].astype(o_ref.dtype)


def pallas_linear(x2d, w, b, *, out_dtype,
                  tm_pref=512, tn_pref=512, tk_pref=1024):
    """x2d: (M, K), w: (S, K, N), b: (S, 1, N)  ->  (S, M, N)."""
    M, K = x2d.shape
    S, K2, N = w.shape
    assert K == K2 and b.shape == (S, 1, N)

    tm = _pick_tile(M, tm_pref, 16, 8)   # bf16 sublane packing
    tn = _pick_tile(N, tn_pref, 128)     # lane dim
    tk = _pick_tile(K, tk_pref, 128)     # lane dim of x / sublane dim of w
    grid = (S, M // tm, N // tn, K // tk)

    limit = _vmem_limit()
    est = (2 * (tm * tk * x2d.dtype.itemsize
                + tk * tn * w.dtype.itemsize
                + tn * b.dtype.itemsize
                + tm * tn * jnp.dtype(out_dtype).itemsize)
           + tm * tn * 4)
    _assert_fits(est, limit, "pallas_linear")

    return pl.pallas_call(
        _linear_kernel,
        out_shape=jax.ShapeDtypeStruct((S, M, N), out_dtype),
        grid=grid,
        in_specs=[
            pl.BlockSpec((tm, tk), lambda s, m, n, k: (m, k)),
            pl.BlockSpec((1, tk, tn), lambda s, m, n, k: (s, k, n)),
            pl.BlockSpec((1, 1, tn), lambda s, m, n, k: (s, 0, n)),
        ],
        out_specs=pl.BlockSpec((1, tm, tn), lambda s, m, n, k: (s, m, n)),
        scratch_shapes=[pltpu.VMEM((tm, tn), jnp.float32)],
        compiler_params=pltpu.CompilerParams(
            dimension_semantics=("parallel", "parallel", "parallel", "arbitrary"),
            vmem_limit_bytes=limit,
        ),
    )(x2d, w, b)


# --------------------------------------------------------------------------
# Kernel 2: causal flash attention over (3, B*T, C) qkv slabs.
#   grid = (B, T/tq, T/tkv), kv innermost ("arbitrary").
#   Heads are split/merged in-kernel (static unroll) so no wrapper transposes.
#   kv index_map is clamped so fully-masked tiles are never DMA'd.
# --------------------------------------------------------------------------
def _flash_kernel(q_ref, k_ref, v_ref, o_ref, m_ref, l_ref, acc_ref, *,
                  scale, n_head, hd, tq, tkv):
    i = pl.program_id(1)   # q tile
    j = pl.program_id(2)   # kv tile (innermost)

    @pl.when(j == 0)
    def _():
        m_ref[...] = jnp.full_like(m_ref, -1e30)
        l_ref[...] = jnp.zeros_like(l_ref)
        acc_ref[...] = jnp.zeros_like(acc_ref)

    # Skip kv tiles entirely above the causal diagonal (their DMA was also
    # elided by the clamped kv index_map).
    @pl.when(j * tkv <= i * tq + (tq - 1))
    def _():
        # Causal mask for this (i, j) tile, shared by all heads.
        row = i * tq + lax.broadcasted_iota(jnp.int32, (tq, tkv), 0)
        col = j * tkv + lax.broadcasted_iota(jnp.int32, (tq, tkv), 1)
        causal_ok = col <= row

        for h in range(n_head):                        # static unroll
            sl = slice(h * hd, (h + 1) * hd)
            q = q_ref[0, :, sl]                        # (tq, hd)  bf16
            k = k_ref[0, :, sl]                        # (tkv, hd) bf16
            v = v_ref[0, :, sl]                        # (tkv, hd) bf16

            # q @ k^T: contract head_dim directly (no explicit transpose).
            s = lax.dot_general(q, k, (((1,), (1,)), ((), ())),
                                preferred_element_type=jnp.float32) * scale
            s = jnp.where(causal_ok, s, -1e30)         # finite sentinel, NaN-safe

            m_prev = m_ref[h]                          # (tq, 128) lane-replicated
            m_new = jnp.maximum(m_prev, jnp.max(s, axis=-1, keepdims=True))
            alpha = jnp.exp(m_prev - m_new)
            p = jnp.exp(s - m_new[:, :1])

            l_ref[h] = alpha * l_ref[h] + jnp.sum(p, axis=-1, keepdims=True)
            acc_ref[h] = alpha[:, :1] * acc_ref[h] + jnp.dot(
                p.astype(v.dtype), v, preferred_element_type=jnp.float32)
            m_ref[h] = m_new

    @pl.when(j == pl.num_programs(2) - 1)
    def _():
        for h in range(n_head):                        # head merge in-kernel
            inv_l = pl.reciprocal(l_ref[h][:, :1], approx=True)
            o_ref[:, h * hd:(h + 1) * hd] = (
                acc_ref[h] * inv_l).astype(o_ref.dtype)


def pallas_flash_attention(qkv, *, n_head, batch, seq,
                           tq_pref=256, tkv_pref=128):
    """qkv: (3, B*T, C) slabs [q, k, v] -> (B*T, C) causal attention output."""
    S, BT, C = qkv.shape
    assert S == 3 and BT == batch * seq and C % n_head == 0
    hd = C // n_head
    scale = 1.0 / math.sqrt(hd)

    tq = _pick_tile(seq, tq_pref, 16, 8)
    tkv = _pick_tile(seq, tkv_pref, 128, 16, 8)
    nqi = seq // tq
    nkj = seq // tkv
    grid = (batch, nqi, nkj)

    limit = _vmem_limit()
    est = (2 * (2 * tq + 2 * tkv) * C * qkv.dtype.itemsize
           + n_head * tq * (2 * _LANES + hd) * 4)
    _assert_fits(est, limit, "pallas_flash_attention")

    def q_map(b, i, j):
        return (0, b * nqi + i, 0)

    def _kv_row(b, i, j):
        # Clamp to the last causally-visible kv tile: fully-masked steps keep
        # the same block index, so Pallas elides their copy entirely.
        return b * nkj + jnp.minimum(j, (i * tq + tq - 1) // tkv)

    def k_map(b, i, j):
        return (1, _kv_row(b, i, j), 0)

    def v_map(b, i, j):
        return (2, _kv_row(b, i, j), 0)

    kernel = functools.partial(_flash_kernel, scale=scale, n_head=n_head,
                               hd=hd, tq=tq, tkv=tkv)
    return pl.pallas_call(
        kernel,
        out_shape=jax.ShapeDtypeStruct((BT, C), qkv.dtype),
        grid=grid,
        in_specs=[
            pl.BlockSpec((1, tq, C), q_map),
            pl.BlockSpec((1, tkv, C), k_map),
            pl.BlockSpec((1, tkv, C), v_map),
        ],
        out_specs=pl.BlockSpec((tq, C), lambda b, i, j: (b * nqi + i, 0)),
        scratch_shapes=[
            pltpu.VMEM((n_head, tq, _LANES), jnp.float32),   # running max
            pltpu.VMEM((n_head, tq, _LANES), jnp.float32),   # running sum
            pltpu.VMEM((n_head, tq, hd), jnp.float32),       # output accumulator
        ],
        compiler_params=pltpu.CompilerParams(
            dimension_semantics=("parallel", "parallel", "arbitrary"),
            vmem_limit_bytes=limit,
        ),
    )(qkv, qkv, qkv)


# --------------------------------------------------------------------------
# Full module forward: c_attn -> causal attention -> c_proj, no intermediate
# wrapper-side transposes/splits.
# --------------------------------------------------------------------------
def attention_forward(x, params, n_head):
    B, T, C = x.shape
    x2d = x.reshape(B * T, C).astype(jnp.bfloat16)

    # c_attn: qkv[s] = x @ W[s] + b[s]  ->  (3, B*T, C) bf16 slabs
    qkv = pallas_linear(x2d, params["w_attn"], params["b_attn"],
                        out_dtype=jnp.bfloat16)

    # flash attention reads q/k/v directly from the slabs, writes (B*T, C) bf16
    y = pallas_flash_attention(qkv, n_head=n_head, batch=B, seq=T)

    # c_proj -> final f32 output
    out = pallas_linear(y, params["w_proj"], params["b_proj"],
                        out_dtype=jnp.float32)
    return out[0].reshape(B, T, C)


def init_params(key, n_embd):
    """nn.Linear-style init.  qkv weights stacked as (3, in, out), proj as
    (1, in, out); weights cast to bf16 once here (no per-forward cast)."""
    k1, k2, k3, k4 = jax.random.split(key, 4)
    bound = 1.0 / math.sqrt(n_embd)
    w_attn = jax.random.uniform(k1, (3, n_embd, n_embd), jnp.float32, -bound, bound)
    b_attn = jax.random.uniform(k2, (3, 1, n_embd), jnp.float32, -bound, bound)
    w_proj = jax.random.uniform(k3, (1, n_embd, n_embd), jnp.float32, -bound, bound)
    b_proj = jax.random.uniform(k4, (1, 1, n_embd), jnp.float32, -bound, bound)
    return {
        "w_attn": w_attn.astype(jnp.bfloat16),
        "b_attn": b_attn,
        "w_proj": w_proj.astype(jnp.bfloat16),
        "b_proj": b_proj,
    }


# Pure-JAX reference mirroring the same bf16 mixed-precision casts
def attention_reference(x, params, n_head):
    B, T, C = x.shape
    hd = C // n_head
    xb = x.reshape(B * T, C).astype(jnp.bfloat16)

    qkv = jnp.einsum("mk,skn->smn", xb, params["w_attn"],
                     preferred_element_type=jnp.float32)
    qkv = (qkv + params["b_attn"]).astype(jnp.bfloat16)       # (3, B*T, C)

    def heads(a):
        return a.reshape(B, T, n_head, hd).transpose(0, 2, 1, 3)

    q, k, v = heads(qkv[0]), heads(qkv[1]), heads(qkv[2])

    s = jnp.einsum("bhqd,bhkd->bhqk", q, k,
                   preferred_element_type=jnp.float32) / math.sqrt(hd)
    mask = jnp.tril(jnp.ones((T, T), bool))
    s = jnp.where(mask[None, None], s, -jnp.inf)
    p = jax.nn.softmax(s, axis=-1)
    y = jnp.einsum("bhqk,bhkd->bhqd", p.astype(jnp.bfloat16), v,
                   preferred_element_type=jnp.float32).astype(jnp.bfloat16)
    y = y.transpose(0, 2, 1, 3).reshape(B * T, C)
    out = (jnp.dot(y, params["w_proj"][0], preferred_element_type=jnp.float32)
           + params["b_proj"][0, 0])
    return out.reshape(B, T, C)


if __name__ == "__main__":
    B, T, C, H = 2, 8, 32, 4   # batch, seq (== block_size), n_embd, n_head

    key = jax.random.PRNGKey(0)
    kx, kp = jax.random.split(key)
    x = jax.random.normal(kx, (B, T, C), jnp.float32)
    params = init_params(kp, C)

    out = attention_forward(x, params, H)
    out = jax.block_until_ready(out)

    ref = attention_reference(x, params, H)
    assert out.shape == (B, T, C)
    err = float(jnp.max(jnp.abs(out - ref)))
    assert jnp.allclose(out, ref, atol=5e-2, rtol=5e-2), err

    print("KERNEL_OK")
</pallas_src>

<mosaic_0001>
module attributes {stable_mosaic.version = 11 : i64} {
  func.func @_linear_kernel(%arg0: i32, %arg1: i32, %arg2: i32, %arg3: i32, %arg4: memref<16x32xbf16, #tpu.memory_space<vmem>>, %arg5: memref<1x32x32xbf16, #tpu.memory_space<vmem>>, %arg6: memref<1x1x32xf32, #tpu.memory_space<vmem>>, %arg7: memref<1x16x32xbf16, #tpu.memory_space<vmem>>, %arg8: memref<16x32xf32, #tpu.memory_space<vmem>>) attributes {dimension_semantics = [#tpu.dimension_semantics<parallel>, #tpu.dimension_semantics<parallel>, #tpu.dimension_semantics<parallel>, #tpu.dimension_semantics<arbitrary>], iteration_bounds = array<i64: 3, 1, 1, 1>, scalar_prefetch = 0 : i64, scratch_operands = 1 : i64, tpu.core_type = #tpu.core_type<tc>, window_params = [{transform_indices = @transform_0, window_bounds = array<i64: 16, 32>}, {transform_indices = @transform_1, window_bounds = array<i64: 1, 32, 32>}, {transform_indices = @transform_2, window_bounds = array<i64: 1, 1, 32>}, {transform_indices = @transform_3, window_bounds = array<i64: 1, 16, 32>}]} {
    %c0_i32 = arith.constant 0 : i32
    %0 = arith.cmpi eq, %arg3, %c0_i32 : i32
    %1 = arith.extui %0 : i1 to i32
    %c0_i32_0 = arith.constant 0 : i32
    %2 = arith.cmpi ne, %1, %c0_i32_0 : i32
    scf.if %2 {
      %c0_11 = arith.constant 0 : index
      %c0_12 = arith.constant 0 : index
      %c0_13 = arith.constant 0 : index
      %13 = vector.load %arg6[%c0_11, %c0_12, %c0_13] : memref<1x1x32xf32, #tpu.memory_space<vmem>>, vector<1x1x32xf32>
      %14 = vector.shape_cast %13 : vector<1x1x32xf32> to vector<1x32xf32>
      %15 = vector.shape_cast %14 : vector<1x32xf32> to vector<1x32xf32>
      %16 = vector.broadcast %15 : vector<1x32xf32> to vector<16x32xf32>
      %c0_14 = arith.constant 0 : index
      %c0_15 = arith.constant 0 : index
      %17 = vector.load %arg8[%c0_14, %c0_15] : memref<16x32xf32, #tpu.memory_space<vmem>>, vector<16x32xf32>
      tpu.vector_store %arg8[%c0_14, %c0_15], %16 {strides = array<i32>} : memref<16x32xf32, #tpu.memory_space<vmem>>, vector<16x32xf32>,
    } else {
    }
    %c0 = arith.constant 0 : index
    %c0_1 = arith.constant 0 : index
    %3 = vector.load %arg8[%c0, %c0_1] : memref<16x32xf32, #tpu.memory_space<vmem>>, vector<16x32xf32>
    %c0_2 = arith.constant 0 : index
    %c0_3 = arith.constant 0 : index
    %4 = vector.load %arg4[%c0_2, %c0_3] : memref<16x32xbf16, #tpu.memory_space<vmem>>, vector<16x32xbf16>
    %c0_4 = arith.constant 0 : index
    %c0_5 = arith.constant 0 : index
    %c0_6 = arith.constant 0 : index
    %5 = vector.load %arg5[%c0_4, %c0_5, %c0_6] : memref<1x32x32xbf16, #tpu.memory_space<vmem>>, vector<1x32x32xbf16>
    %6 = vector.shape_cast %5 : vector<1x32x32xbf16> to vector<32x32xbf16>
    %cst = arith.constant dense<0.000000e+00> : vector<16x32xf32>
    %7 = tpu.matmul %4, %6, %cst {dimension_numbers = #tpu.dot_dimension_numbers<[1], [0], [0], [1], [0, 0, 1, 1], [], []>} : vector<16x32xbf16>, vector<32x32xbf16>, vector<16x32xf32> -> vector<16x32xf32>
    %8 = arith.addf %3, %7 : vector<16x32xf32>
    %c0_7 = arith.constant 0 : index
    %c0_8 = arith.constant 0 : index
    %9 = vector.load %arg8[%c0_7, %c0_8] : memref<16x32xf32, #tpu.memory_space<vmem>>, vector<16x32xf32>
    tpu.vector_store %arg8[%c0_7, %c0_8], %8 {strides = array<i32>} : memref<16x32xf32, #tpu.memory_space<vmem>>, vector<16x32xf32>,
    %c0_i32_9 = arith.constant 0 : i32
    %10 = arith.cmpi eq, %arg3, %c0_i32_9 : i32
    %11 = arith.extui %10 : i1 to i32
    %c0_i32_10 = arith.constant 0 : i32
    %12 = arith.cmpi ne, %11, %c0_i32_10 : i32
    scf.if %12 {
      %c0_11 = arith.constant 0 : index
      %c0_12 = arith.constant 0 : index
      %13 = vector.load %arg8[%c0_11, %c0_12] : memref<16x32xf32, #tpu.memory_space<vmem>>, vector<16x32xf32>
      %14 = arith.truncf %13 : vector<16x32xf32> to vector<16x32xbf16>
      %c0_13 = arith.constant 0 : index
      %c0_14 = arith.constant 0 : index
      %c0_15 = arith.constant 0 : index
      %15 = vector.load %arg7[%c0_13, %c0_14, %c0_15] : memref<1x16x32xbf16, #tpu.memory_space<vmem>>, vector<1x16x32xbf16>
      %16 = vector.shape_cast %15 : vector<1x16x32xbf16> to vector<16x32xbf16>
      %17 = vector.shape_cast %14 : vector<16x32xbf16> to vector<1x16x32xbf16>
      tpu.vector_store %arg7[%c0_13, %c0_14, %c0_15], %17 {strides = array<i32>} : memref<1x16x32xbf16, #tpu.memory_space<vmem>>, vector<1x16x32xbf16>,
    } else {
    }
    return
  }
  func.func @transform_0(%arg0: i32, %arg1: i32, %arg2: i32, %arg3: i32) -> (i32, i32) {
    %c0_i32 = arith.constant 0 : i32
    return %arg1, %arg3 : i32, i32
  }
  func.func @transform_1(%arg0: i32, %arg1: i32, %arg2: i32, %arg3: i32) -> (i32, i32, i32) {
    %c0_i32 = arith.constant 0 : i32
    return %arg0, %arg3, %arg2 : i32, i32, i32
  }
  func.func @transform_2(%arg0: i32, %arg1: i32, %arg2: i32, %arg3: i32) -> (i32, i32, i32) {
    %c0_i32 = arith.constant 0 : i32
    %c0_i32_0 = arith.constant 0 : i32
    return %arg0, %c0_i32, %arg2 : i32, i32, i32
  }
  func.func @transform_3(%arg0: i32, %arg1: i32, %arg2: i32, %arg3: i32) -> (i32, i32, i32) {
    %c0_i32 = arith.constant 0 : i32
    return %arg0, %arg1, %arg2 : i32, i32, i32
  }
}

</mosaic_0001>

<llo_original>
// kernel: tpu_custom_call.1
$region0: #{tpu_custom_call.1}
  #allocation0 [shape = 'u32[]', space=smem, size = 0x4, offset = 0x4, fixed_abs, tag = 'smem constant byte address 0x4 - core index']
  #allocation1 [shape = 'u32[144,128]{1,0:T(1,128)}', space=vmem, size = 0x12000, scoped, tag = 'internal scratch']
  #allocation2 [shape = 'f32[16,32]{1,0:T(8,128)}', space=vmem, size = 0x2000, scoped, tag = 'scratch operand']
  %s0 = inlined_call_operand.hbm [shape: bf16[16,32], index: 0, kind: input, shape index: {}]
  %s1 = inlined_call_operand.hbm [shape: bf16[3,32,32], index: 1, kind: input, shape index: {}]
  %s2 = inlined_call_operand.vmem [shape: f32[3,1,32], index: 2, kind: input, shape index: {}]
  %s3 = inlined_call_operand.hbm [shape: bf16[3,16,32], index: 3, kind: output, shape index: {}]
  %s4 = sld [smem:[#allocation0]]
  $region61: #{tpu_custom_call.1} parent=0
    _
  %s6 = ssub.s32 1, %s4
  %s7 = scalar_select 0, %s6, %s4
  $region1: #{tpu_custom_call.1} parent=0
    #allocation3 [shape = 'u8[4096]{0}', space=vmem, size = 0x1000, scoped, tag = 'input window, operand 0, single buffered']
    #allocation4 [shape = 's32[2]{0}', space=sflag, size = 0x8, scoped, tag = 'scoped memory for tpu_custom_call.1']
    #allocation5 [shape = 's32[2]{0}', space=sflag, size = 0x8, scoped, tag = 'scoped memory for tpu_custom_call.1']
    #allocation6 [shape = 'u8[16384]{0}', space=vmem, size = 0x4000, scoped, tag = 'input window, operand 1']
    #allocation7 [shape = 's32[2]{0}', space=sflag, size = 0x8, scoped, tag = 'scoped memory for tpu_custom_call.1']
    #allocation8 [shape = 'u8[8192]{0}', space=vmem, size = 0x2000, scoped, tag = 'output window, operand 0']
    %8 = vsyncpa [#allocation4], 0
    %9 = vsyncpa [#allocation7], 0
    %s10 = scalar_lea.sflag [#allocation7], 1
    %11 = vsyncpa %s10, 0
    %12 = vsyncpa [#allocation5], 0
    %s13 = scalar_lea.sflag [#allocation5], 1
    %14 = vsyncpa %s13, 0
    loop: start=0, step=1, limit=5
    $region2: #{tpu_custom_call.1} parent=1 // loop_pre_header
      _
    $region3: #{tpu_custom_call.1} parent=1 // loop_header
      %s16 = sphi 0, %s20
      %p17 = scmp.ge.s32.totalorder %s16, 5
      %s23 = sphi 0, %s49
      %s24 = sphi 0, %s45
      %s25 = sphi 0, %s41
      %s26 = sphi 0, %s37
      %s27 = sphi 0, %s23
      %s28 = sphi 0, %s24
      %s29 = sphi 0, %s25
      %s30 = sphi 0, %s26
      %s31 = sphi 0, %s27
      %s32 = sphi 0, %s28
      %s33 = sphi 0, %s29
      %s34 = sphi 0, %s30
      %s54 = sphi 0, %s56
      %s57 = sphi 0, %s54
      %s58 = sphi 0, %s57
      %s74 = sphi 0, %s58
      %s84 = sphi 0, %s86
      %s87 = sphi 0, %s84
      %s88 = sphi 0, %s87
      %s104 = sphi 0, %s88
      %s112 = sphi 0, %s114
      %s115 = sphi 0, %s112
      %s116 = sphi 0, %s115
      %s132 = sphi 0, %s116
      %s142 = sphi 0, %s144
      %s145 = sphi 0, %s142
      %s146 = sphi 0, %s145
      %s162 = sphi 0, %s146
    $region4: #{tpu_custom_call.1} parent=1 // loop_header_branch
      %19 = sbr.rel (%p17) target = $region8
    $region5: #{tpu_custom_call.1} parent=1 // loop_body
      %s21 = ssub.s32 %s16, 1
      %s22 = ssub.s32 %s16, 2
      %s35 = sadd.s32 1, %s26
      %p36 = scmp.ge.s32.totalorder %s35, 1
      %s37 = scalar_select %p36, 0, %s35
      %s38 = sadd.s32 1, %s25
      %s39 = scalar_select %p36, %s38, %s25
      %p40 = scmp.ge.s32.totalorder %s39, 1
      %s41 = scalar_select %p40, 0, %s39
      %s42 = sadd.s32 1, %s24
      %s43 = scalar_select %p40, %s42, %s24
      %p44 = scmp.ge.s32.totalorder %s43, 1
      %s45 = scalar_select %p44, 0, %s43
      %s46 = sadd.s32 1, %s23
      %s47 = scalar_select %p44, %s46, %s23
      %p48 = scmp.ge.s32.totalorder %s47, 3
      %s49 = scalar_select %p48, 0, %s47
      %s50 = ssub.s32 %s24, %s45
      %s51 = ssub.s32 %s26, %s37
      %s52 = sor.u32 %s50, %s51
      %p53 = scmp.eq.s32.totalorder %s52, 0
      %s55 = sadd.s32 %s54, 1
      %s56 = scalar_select %p53, %s54, %s55
      %p59 = pneg %p53
      %p60 = scmp.eq.s32.totalorder %s16, 2
      %p61 = por %p59, %p60
      %p62 = scmp.ne.s32.totalorder %s54, %s57
      %p63 = scmp.eq.s32.totalorder %s16, 0
      %p64 = por %p62, %p63
      %p65 = scmp.ne.s32.totalorder %s54, %s57
      %p66 = scmp.eq.s32.totalorder %s21, 2
      %p67 = por %p65, %p66
      %p68 = scmp.ne.s32.totalorder %s57, %s58
      %p69 = scmp.eq.s32.totalorder %s21, 0
      %p70 = por %p68, %p69
      %p71 = scmp.ne.s32.totalorder %s57, %s58
      %p72 = scmp.eq.s32.totalorder %s22, 2
      %p73 = por %p71, %p72
      %p75 = scmp.ne.s32.totalorder %s58, %s74
      %p76 = scmp.eq.s32.totalorder %s22, 0
      %p77 = por %p75, %p76
      %s78 = ssub.s32 %s23, %s49
      %s79 = ssub.s32 %s26, %s37
      %s80 = sor.u32 %s78, %s79
      %s81 = ssub.s32 %s25, %s41
      %s82 = sor.u32 %s80, %s81
      %p83 = scmp.eq.s32.totalorder %s82, 0
      %s85 = sadd.s32 %s84, 1
      %s86 = scalar_select %p83, %s84, %s85
      %p89 = pneg %p83
      %p90 = scmp.eq.s32.totalorder %s16, 2
      %p91 = por %p89, %p90
      %p92 = scmp.ne.s32.totalorder %s84, %s87
      %p93 = scmp.eq.s32.totalorder %s16, 0
      %p94 = por %p92, %p93
      %p95 = scmp.ne.s32.totalorder %s84, %s87
      %p96 = scmp.eq.s32.totalorder %s21, 2
      %p97 = por %p95, %p96
      %p98 = scmp.ne.s32.totalorder %s87, %s88
      %p99 = scmp.eq.s32.totalorder %s21, 0
      %p100 = por %p98, %p99
      %p101 = scmp.ne.s32.totalorder %s87, %s88
      %p102 = scmp.eq.s32.totalorder %s22, 2
      %p103 = por %p101, %p102
      %p105 = scmp.ne.s32.totalorder %s88, %s104
      %p106 = scmp.eq.s32.totalorder %s22, 0
      %p107 = por %p105, %p106
      %s108 = ssub.s32 %s23, %s49
      %s109 = ssub.s32 %s25, %s41
      %s110 = sor.u32 %s108, %s109
      %p111 = scmp.eq.s32.totalorder %s110, 0
      %s113 = sadd.s32 %s112, 1
      %s114 = scalar_select %p111, %s112, %s113
      %p117 = pneg %p111
      %p118 = scmp.eq.s32.totalorder %s16, 2
      %p119 = por %p117, %p118
      %p120 = scmp.ne.s32.totalorder %s112, %s115
      %p121 = scmp.eq.s32.totalorder %s16, 0
      %p122 = por %p120, %p121
      %p123 = scmp.ne.s32.totalorder %s112, %s115
      %p124 = scmp.eq.s32.totalorder %s21, 2
      %p125 = por %p123, %p124
      %p126 = scmp.ne.s32.totalorder %s115, %s116
      %p127 = scmp.eq.s32.totalorder %s21, 0
      %p128 = por %p126, %p127
      %p129 = scmp.ne.s32.totalorder %s115, %s116
      %p130 = scmp.eq.s32.totalorder %s22, 2
      %p131 = por %p129, %p130
      %p133 = scmp.ne.s32.totalorder %s116, %s132
      %p134 = scmp.eq.s32.totalorder %s22, 0
      %p135 = por %p133, %p134
      %s136 = ssub.s32 %s23, %s49
      %s137 = ssub.s32 %s24, %s45
      %s138 = sor.u32 %s136, %s137
      %s139 = ssub.s32 %s25, %s41
      %s140 = sor.u32 %s138, %s139
      %p141 = scmp.eq.s32.totalorder %s140, 0
      %s143 = sadd.s32 %s142, 1
      %s144 = scalar_select %p141, %s142, %s143
      %p147 = pneg %p141
      %p148 = scmp.eq.s32.totalorder %s16, 2
      %p149 = por %p147, %p148
      %p150 = scmp.ne.s32.totalorder %s142, %s145
      %p151 = scmp.eq.s32.totalorder %s16, 0
      %p152 = por %p150, %p151
      %p153 = scmp.ne.s32.totalorder %s142, %s145
      %p154 = scmp.eq.s32.totalorder %s21, 2
      %p155 = por %p153, %p154
      %p156 = scmp.ne.s32.totalorder %s145, %s146
      %p157 = scmp.eq.s32.totalorder %s21, 0
      %p158 = por %p156, %p157
      %p159 = scmp.ne.s32.totalorder %s145, %s146
      %p160 = scmp.eq.s32.totalorder %s22, 2
      %p161 = por %p159, %p160
      %p163 = scmp.ne.s32.totalorder %s146, %s162
      %p164 = scmp.eq.s32.totalorder %s22, 0
      %p165 = por %p163, %p164
      %p166 = scmp.le.s32.totalorder 1, %s16
      %p167 = scmp.lt.s32.totalorder %s16, 4
      %p168 = pnand %p166, %p167
      %p169 = pneg %p168
      // Predicated region
      $region9: #{tpu_custom_call.1} parent=5 // pred_check
        _
      $region10: #{tpu_custom_call.1} parent=5 // pred_check_branch
        %171 = sbr.rel (%p168) target = $region12
      $region11: #{tpu_custom_call.1} parent=5 // pred_region
        %s172 = ssub.s32 %s16, 1
        // Predicated region
        $region13: #{tpu_custom_call.1} parent=11 // pred_check
          %p173 = pneg %p70
        $region14: #{tpu_custom_call.1} parent=11 // pred_check_branch
          %175 = sbr.rel (%p173) target = $region16
        $region15: #{tpu_custom_call.1} parent=11 // pred_region
          %s176 = smul.u32 2, %s28
          %s178 = ssub.s32 128, 128
          %179 = vsyncadd [#allocation4], %s178
          %s180 = sadd.s32 %s30, %s176
          %s181 = smul.addr %s180, 64
          %s182 = scalar_lea.hbm %s0, %s181
          %s183 = sshll.u32 [#allocation3], 4
          %s184 = int_to_ptr.vmem [resolvable:$true] %s183
          %189 = dma.hbm_to_vmem [thread:$0]  %s182, 128, %s184, [#allocation4], 64, 64, 4
        $region16: #{tpu_custom_call.1} parent=11 // pred_fallthru
          _
      $region12: #{tpu_custom_call.1} parent=5 // pred_fallthru
        _
      %p190 = scmp.lt.s32.totalorder %s16, 3
      // Predicated region
      $region17: #{tpu_custom_call.1} parent=5 // pred_check
        %p191 = pneg %p190
      $region18: #{tpu_custom_call.1} parent=5 // pred_check_branch
        %193 = sbr.rel (%p191) target = $region20
      $region19: #{tpu_custom_call.1} parent=5 // pred_region
        // Predicated region
        $region21: #{tpu_custom_call.1} parent=19 // pred_check
          %p194 = pneg %p94
        $region22: #{tpu_custom_call.1} parent=19 // pred_check_branch
          %196 = sbr.rel (%p194) target = $region24
        $region23: #{tpu_custom_call.1} parent=19 // pred_region
          %s197 = sand.u32 %s84, 1
          %s198 = scalar_lea.sflag [#allocation7], %s197
          %s199 = sand.u32 %s84, 1
          %s200 = smul.addr %s199, 16
          %s201 = scalar_lea.vmem [#allocation6], %s200
          %s202 = smul.u32 4, %s26
          %s204 = ssub.s32 256, 256
          %205 = vsyncadd %s198, %s204
          %s206 = sadd.s32 %s25, %s202
          %s207 = smul.addr %s23, 4
          %s208 = sadd.s32 %s206, %s207
          %s209 = smul.addr %s208, 64
          %s210 = scalar_lea.hbm %s1, %s209
          %s211 = sshll.u32 %s201, 4
          %s212 = int_to_ptr.vmem [resolvable:$true] %s211
          %217 = dma.hbm_to_vmem [thread:$0]  %s210, 256, %s212, %s198, 64, 64, 4
        $region24: #{tpu_custom_call.1} parent=19 // pred_fallthru
          _
        // Predicated region
        $region25: #{tpu_custom_call.1} parent=19 // pred_check
          %p218 = pneg %p122
        $region26: #{tpu_custom_call.1} parent=19 // pred_check_branch
          %220 = sbr.rel (%p218) target = $region28
        $region27: #{tpu_custom_call.1} parent=19 // pred_region
          %p221 = scmp.lt.s32.totalorder %s23, 2
          %s222 = scalar_select %p221, %s23, 2
          %p223 = scmp.lt.s32.totalorder %s25, 0
          %s224 = scalar_select %p223, %s25, 0
          %s225 = sadd.s32 %s224, %s222
          %s226 = scalar_lea.vmem %s2, %s225
        $region28: #{tpu_custom_call.1} parent=19 // pred_fallthru
          _
      $region20: #{tpu_custom_call.1} parent=5 // pred_fallthru
        _
      %p227 = scmp.le.s32.totalorder 1, %s16
      %p228 = scmp.lt.s32.totalorder %s16, 4
      %p229 = pnand %p227, %p228
      %p230 = pneg %p229
      // Predicated region
      $region29: #{tpu_custom_call.1} parent=5 // pred_check
        _
      $region30: #{tpu_custom_call.1} parent=5 // pred_check_branch
        %232 = sbr.rel (%p229) target = $region32
      $region31: #{tpu_custom_call.1} parent=5 // pred_region
        %s233 = ssub.s32 %s16, 1
        // Predicated region
        $region33: #{tpu_custom_call.1} parent=31 // pred_check
          %p234 = pneg %p70
        $region34: #{tpu_custom_call.1} parent=31 // pred_check_branch
          %236 = sbr.rel (%p234) target = $region36
        $region35: #{tpu_custom_call.1} parent=31 // pred_region
          %237 = dma.done [#allocation4], 128
        $region36: #{tpu_custom_call.1} parent=31 // pred_fallthru
          _
        %s238 = sand.u32 %s87, 1
        %s239 = scalar_lea.sflag [#allocation7], %s238
        %s240 = sand.u32 %s87, 1
        %s241 = smul.addr %s240, 16
        %s242 = scalar_lea.vmem [#allocation6], %s241
        // Predicated region
        $region37: #{tpu_custom_call.1} parent=31 // pred_check
          %p243 = pneg %p100
        $region38: #{tpu_custom_call.1} parent=31 // pred_check_branch
          %245 = sbr.rel (%p243) target = $region40
        $region39: #{tpu_custom_call.1} parent=31 // pred_region
          %246 = dma.done %s239, 256
        $region40: #{tpu_custom_call.1} parent=31 // pred_fallthru
          _
        %p247 = pneg %p70
        %p248 = pneg %p67
        %s249 = sand.u32 %s87, 1
        %s250 = scalar_lea.sflag [#allocation7], %s249
        %s251 = sand.u32 %s87, 1
        %s252 = smul.addr %s251, 16
        %s253 = scalar_lea.vmem [#allocation6], %s252
        %p254 = pneg %p100
        %p255 = pneg %p97
        %p256 = scmp.lt.s32.totalorder %s27, 2
        %s257 = scalar_select %p256, %s27, 2
        %p258 = scmp.lt.s32.totalorder %s29, 0
        %s259 = scalar_select %p258, %s29, 0
        %s260 = sadd.s32 %s259, %s257
        %s261 = scalar_lea.vmem %s2, %s260
        %p262 = pneg %p128
        %p263 = pneg %p125
        %p264 = pneg %p158
        %p265 = pneg %p155
        %s266 = sand.u32 %s145, 1
        %s267 = scalar_lea.sflag [#allocation5], %s266
        %s268 = sand.u32 %s145, 1
        %s269 = smul.addr %s268, 8
        %s270 = scalar_lea.vmem [#allocation8], %s269
        %s271 = smul.u32 2, %s28
        %s272 = smul.u32 4, %s30
        %p273 = scmp.lt.s32.totalorder %s27, 2
        %s274 = scalar_select %p273, %s27, 2
        %p275 = scmp.lt.s32.totalorder %s29, 0
        %s276 = scalar_select %p275, %s29, 0
        %s277 = sadd.s32 %s276, %s274
        %s278 = scalar_lea.vmem %s2, %s277
        %s279 = smul.u32 2, %s28
        %p281 = scmp.eq.s32.totalorder %s30, 0
        // Predicated region
        $region41: #{tpu_custom_call.1} parent=31 // pred_check
          %p282 = pneg %p281
        $region42: #{tpu_custom_call.1} parent=31 // pred_check_branch
          %284 = sbr.rel (%p282) target = $region44
        $region43: #{tpu_custom_call.1} parent=31 // pred_region
          %v285 = vld [vmem:[%s278] sm:$0x1]
          %v287 = vlaneseq
          %v288 = vshrl.u32 %v287, 7
          %v289 = vsub.s32 0, %v288
          %v290 = vrot.slane %v285, %v289
          %vm292 = vcmask 261120
          %293 = vst.msk [vmem:[#allocation2] sm:$0xff] %vm292, %v290
          %294 = vst.msk [vmem:[#allocation2 + $0x8] sm:$0xff] %vm292, %v290
        $region44: #{tpu_custom_call.1} parent=31 // pred_fallthru
          _
        %v295 = vld [vmem:[#allocation2] sm:$0xff]
        %v296 = vld [vmem:[#allocation2 + $0x8] sm:$0xff]
        %v297 = vld [vmem:[#allocation3] sm:$0xf]
        %v298 = vld [vmem:[#allocation3 + $0x4] sm:$0xf]
        %v299 = vld [vmem:[%s242] sm:$0xf]
        %v300 = vld [vmem:[%s242 + $0x4] sm:$0xf]
        %v301 = vld [vmem:[%s242 + $0x8] sm:$0xf]
        %v302 = vld [vmem:[%s242 + $0xc] sm:$0xf]
        %v305 = vunpack.c.l.b16 %v297
        %v306 = vunpack.c.l.b16 %v298
        %v307 = vpack.c.b16 %v306, %v305
        %v312 = vunpack.c.l.b16 %v299
        %v313 = vunpack.c.l.b16 %v300
        %v314 = vunpack.c.l.b16 %v301
        %v315 = vunpack.c.l.b16 %v302
        %v316 = vpack.c.b16 %v313, %v312
        %v317 = vpack.c.b16 %v315, %v314
        %vm320 = vcmask 261120
        %v322 = vsel %vm320, %v307, 0
        %324 = vmatprep.subr.bf16.mxu0 0
        %325 = vmatpush1.bf16.msra.mxu0 0
        %326 = vmatprep.subr.bf16.mxu0 0
        %327 = vmatpush1.bf16.msra.mxu0 0
        %328 = vmatprep.subr.bf16.mxu0 0
        %329 = vmatpush1.bf16.msra.mxu0 0
        %330 = vmatprep.subr.bf16.mxu0 0
        %331 = vmatpush1.bf16.msra.mxu0 0
        %332 = vmatprep.subr.bf16.mxu0 0
        %333 = vmatpush1.bf16.msra.mxu0 0
        %334 = vmatprep.subr.bf16.mxu0 0
        %335 = vmatpush1.bf16.msra.mxu0 0
        %336 = vmatprep.subr.bf16.mxu0 0
        %337 = vmatpush1.bf16.msra.mxu0 %v317
        %338 = vmatprep.subr.bf16.mxu0 0
        %339 = vmatpush1.bf16.msra.mxu0 %v316
        %340 = vmatprep.subr.bf16.mxu0 0
        %341 = vmatpush2.bf16.msra.mxu0 0
        %342 = vmatprep.subr.bf16.mxu0 0
        %343 = vmatpush2.bf16.msra.mxu0 0
        %344 = vmatprep.subr.bf16.mxu0 0
        %345 = vmatpush2.bf16.msra.mxu0 0
        %346 = vmatprep.subr.bf16.mxu0 0
        %347 = vmatpush2.bf16.msra.mxu0 0
        %348 = vmatprep.subr.bf16.mxu0 0
        %349 = vmatpush2.bf16.msra.mxu0 0
        %350 = vmatprep.subr.bf16.mxu0 0
        %351 = vmatpush2.bf16.msra.mxu0 0
        %352 = vmatprep.subr.bf16.mxu0 0
        %353 = vmatpush2.bf16.msra.mxu0 0
        %354 = vmatprep.subr.bf16.mxu0 0
        %355 = vmatpush2.bf16.msra.mxu0 0
        %356 = vmatprep.mubr.bf16.mxu0 0
        %357 = vmatmul.mubr.bf16.gmra.mxu0 %v322
        %v358 = vpop.f32.mrf.mxu0
        %v359 = vadd.f32 0.0, %v358
        %v360 = vpop.f32.mrf.mxu0
        %v361 = vpop.f32.mrf.mxu0
        %v362 = vadd.f32 0.0, %v361
        %v363 = vpop.f32.mrf.mxu0
        %364 = vdwg.mxu0
        %v365 = vadd.f32 %v295, %v359
        %v366 = vadd.f32 %v296, %v362
        %367 = vst.msk [vmem:[#allocation2] sm:$0xff] %vm320, %v365
        %368 = vst.msk [vmem:[#allocation2 + $0x8] sm:$0xff] %vm320, %v366
        // Predicated region
        $region45: #{tpu_custom_call.1} parent=31 // pred_check
          %p369 = pneg %p281
        $region46: #{tpu_custom_call.1} parent=31 // pred_check_branch
          %371 = sbr.rel (%p369) target = $region48
        $region47: #{tpu_custom_call.1} parent=31 // pred_region
          %v372 = vld [vmem:[#allocation2] sm:$0xff]
          %v373 = vld [vmem:[#allocation2 + $0x8] sm:$0xff]
          %v374 = vpack.c.bf16 %v373, %v372
          %v376 = vunpack.c.l.b16 %v374
          %v377 = vunpack.c.h.b16 %v374
          %v378 = vpack.c.b16 %v376, %v376
          %v379 = vpack.c.b16 %v377, %v377
          %vm382 = vcmask 257024
          %383 = vst.msk [vmem:[%s270] sm:$0xf] %vm382, %v378
          %384 = vst.msk [vmem:[%s270 + $0x4] sm:$0xf] %vm382, %v379
        $region48: #{tpu_custom_call.1} parent=31 // pred_fallthru
          _
        %s385 = sand.u32 %s145, 1
        %s386 = scalar_lea.sflag [#allocation5], %s385
        %s387 = sand.u32 %s145, 1
        %s388 = smul.addr %s387, 8
        %s389 = scalar_lea.vmem [#allocation8], %s388
        // Predicated region
        $region49: #{tpu_custom_call.1} parent=31 // pred_check
          %p390 = pneg %p155
        $region50: #{tpu_custom_call.1} parent=31 // pred_check_branch
          %392 = sbr.rel (%p390) target = $region52
        $region51: #{tpu_custom_call.1} parent=31 // pred_region
          %s393 = smul.u32 2, %s28
          %s395 = ssub.s32 128, 128
          %396 = vsyncadd %s386, %s395
          %s397 = sadd.s32 %s29, %s393
          %s398 = smul.addr %s27, 2
          %s399 = sadd.s32 %s397, %s398
          %s400 = smul.addr %s399, 64
          %s401 = scalar_lea.hbm %s3, %s400
          %s402 = sshll.u32 %s389, 4
          %s403 = int_to_ptr.vmem [resolvable:$true] %s402
          %408 = dma.vmem_to_hbm [thread:$0]  %s403, 128, %s401, %s386, 64, 64, 4
        $region52: #{tpu_custom_call.1} parent=31 // pred_fallthru
          _
      $region32: #{tpu_custom_call.1} parent=5 // pred_fallthru
        _
      %p409 = scmp.le.s32.totalorder 2, %s16
      // Predicated region
      $region53: #{tpu_custom_call.1} parent=5 // pred_check
        %p410 = pneg %p409
      $region54: #{tpu_custom_call.1} parent=5 // pred_check_branch
        %412 = sbr.rel (%p410) target = $region56
      $region55: #{tpu_custom_call.1} parent=5 // pred_region
        %s413 = ssub.s32 %s16, 2
        // Predicated region
        $region57: #{tpu_custom_call.1} parent=55 // pred_check
          %p414 = pneg %p161
        $region58: #{tpu_custom_call.1} parent=55 // pred_check_branch
          %416 = sbr.rel (%p414) target = $region60
        $region59: #{tpu_custom_call.1} parent=55 // pred_region
          %s417 = sand.u32 %s146, 1
          %s418 = scalar_lea.sflag [#allocation5], %s417
          %s419 = sand.u32 %s146, 1
          %s420 = smul.addr %s419, 8
          %s421 = scalar_lea.vmem [#allocation8], %s420
          %422 = dma.done %s418, 128
        $region60: #{tpu_custom_call.1} parent=55 // pred_fallthru
          _
      $region56: #{tpu_custom_call.1} parent=5 // pred_fallthru
        _
    $region6: #{tpu_custom_call.1} parent=1 // loop_footer
      %s20 = sadd.s32 1, %s16
    $region7: #{tpu_custom_call.1} parent=1 // loop_footer_branch
      %15 = sbr.rel target = $region3
    $region8: #{tpu_custom_call.1} parent=1 // loop_exit
      _
    %423 = vsyncpa [#allocation4], 1
    %s424 = scalar_lea.sflag [#allocation4], 1
    %425 = vsyncpa %s424, 1
    %426 = vsyncpa [#allocation7], 1
    %s427 = scalar_lea.sflag [#allocation7], 1
    %428 = vsyncpa %s427, 1
    %429 = vsyncpa [#allocation5], 1
    %s430 = scalar_lea.sflag [#allocation5], 1
    %431 = vsyncpa %s430, 1

</llo_original>
